<compile_context>
chip_gen: v5e
topology: v5e:2x2
jax: 0.10.0
libtpu: 0.0.40
codegen_flags: <defaults>
</compile_context>

<pallas_src>
import functools

import jax
import jax.numpy as jnp
from jax.experimental import pallas as pl
from jax.experimental.pallas import tpu as pltpu


def _pix_obj_prob_kernel(x_ref, w1_ref, b1_ref, w2_ref, b2_ref, o_ref):
    # x_ref : (D, T)      pixel tile, channel-major (pixels on lanes)
    # w1_ref: (m, D)      fc_ct weight, rows ordered [even outputs ; odd outputs]
    # b1_ref: (m, 1)      fc_ct bias, same ordering
    # w2_ref: (K, m2)     fc_probility weight
    # b2_ref: (K, 1)      fc_probility bias
    # o_ref : (K, T)      per-pixel class probabilities
    x = x_ref[...].astype(jnp.float32)

    # fc_ct as one matmul; adjacent-pair max becomes a static sublane-slice max.
    y = jnp.dot(w1_ref[...], x, preferred_element_type=jnp.float32) + b1_ref[...]
    m2 = w2_ref.shape[1]
    h = jnp.maximum(y[:m2, :], y[m2:, :])          # (m2, T)

    # dropout(p=0.2): identity at inference time.
    # TODO(synk): training-mode dropout (stochastic mask via pltpu.prng_*) not emitted.

    # fc_probility
    logits = jnp.dot(w2_ref[...], h, preferred_element_type=jnp.float32) + b2_ref[...]

    # softmax over the K (sublane) axis -- exactly normalized (HBM-bound kernel:
    # the exact divide costs nothing vs. the approximate EUP reciprocal).
    mx = jnp.max(logits, axis=0, keepdims=True)
    e = jnp.exp(logits - mx)
    denom = jnp.sum(e, axis=0, keepdims=True)
    o_ref[...] = (e / denom).astype(o_ref.dtype)


def _choose_tile_pix(hw, batch, target=32768):
    """Pixel-tile size: multiple of 128, <= target, ragged last tile allowed.

    Sized against the worst per-generation VMEM budget (v5e 16 MiB scoped is
    raised to 32 MiB via vmem_limit_bytes; v7x has 32 MiB scoped / 64 MiB
    physical per TC): ~0.4 KB/pixel worst case -> ~12.5 MiB at 32768 pixels.
    Also keeps the total grid-step count >= 2 where possible so both v7x
    TensorCores get work.
    """
    if hw <= 128:
        return hw                                   # block == full dim (layout rule)
    tile = min(target, hw)
    tile = max(128, (tile // 128) * 128)            # lane-aligned
    if batch * ((hw + tile - 1) // tile) < 2:       # v7x megacore balance
        half = (hw + 1) // 2
        tile = max(128, ((half + 127) // 128) * 128)
    return tile


@functools.partial(
    jax.jit, static_argnames=("tile_pix", "out_dtype", "channel_major_out"))
def pix_object_probility(ctx, w_ct, b_ct, w_p, b_p, *, tile_pix=None,
                         out_dtype=jnp.bfloat16, channel_major_out=False):
    """ctx: (B, D, H, W).  w_ct: (m, D), b_ct: (m,), w_p: (K, m//2), b_p: (K,).

    Returns (B, H, W, K) probabilities (module layout), or (B, K, H, W) when
    channel_major_out=True (skips the extra HBM transpose pass -- preferred for
    consumers like the Decoder's spatial reduction).
    """
    B, D, H, W = ctx.shape
    m = w_ct.shape[0]
    m2 = m // 2
    K = w_p.shape[0]
    HW = H * W

    if tile_pix is None:
        tile_pix = _choose_tile_pix(HW, B)
    n_tiles = pl.cdiv(HW, tile_pix)                 # ragged last tile is OK

    # Channel-major input: free, contiguous reshape of NCHW (no transpose pass).
    x = ctx.reshape(B, D, HW)

    # Pre-order fc_ct outputs as [evens ; odds] so the pairwise max in the kernel
    # is a static sublane slice; merge biases the same way.
    w1 = jnp.concatenate([w_ct[0::2, :], w_ct[1::2, :]], axis=0)      # (m, D)
    b1 = jnp.concatenate([b_ct[0::2], b_ct[1::2]]).reshape(m, 1)      # (m, 1)
    w2 = w_p                                                          # (K, m2)
    b2 = b_p.reshape(K, 1)                                            # (K, 1)

    out_cm = pl.pallas_call(
        _pix_obj_prob_kernel,
        out_shape=jax.ShapeDtypeStruct((B, K, HW), out_dtype),
        grid_spec=pltpu.PrefetchScalarGridSpec(
            num_scalar_prefetch=0,
            grid=(B, n_tiles),
            in_specs=[
                pl.BlockSpec((None, D, tile_pix), lambda b, p: (b, 0, p)),  # x tile
                pl.BlockSpec((m, D), lambda b, p: (0, 0)),                  # w1
                pl.BlockSpec((m, 1), lambda b, p: (0, 0)),                  # b1
                pl.BlockSpec((K, m2), lambda b, p: (0, 0)),                 # w2
                pl.BlockSpec((K, 1), lambda b, p: (0, 0)),                  # b2
            ],
            out_specs=pl.BlockSpec((None, K, tile_pix), lambda b, p: (b, 0, p)),
        ),
        compiler_params=pltpu.CompilerParams(
            dimension_semantics=("parallel", "parallel"),
            # Safe on all generations (physical VMEM/TC >= 64 MiB everywhere);
            # raises v5e's 16 MiB scoped default so 32K-pixel tiles compile.
            vmem_limit_bytes=32 * 1024 * 1024),
    )(x, w1, b1, w2, b2)

    if channel_major_out:
        # Free reshape -- no extra HBM pass.  Consumers that reduce over H,W
        # (e.g. Decoder.forward's (attention * features).sum) should use this.
        return out_cm.reshape(B, K, H, W)

    # Module-faithful (B, H, W, K) layout (plain-JAX glue; costs one HBM pass).
    return jnp.transpose(out_cm, (0, 2, 1)).reshape(B, H, W, K)


def _reference(ctx, w_ct, b_ct, w_p, b_p):
    """Pure-JAX reference mirroring the PyTorch forward (eval mode)."""
    x = jnp.transpose(ctx, (0, 2, 3, 1))                       # (B,H,W,D)
    y = jnp.einsum("bhwd,md->bhwm", x, w_ct) + b_ct            # (B,H,W,m)
    B, H, W, m = y.shape
    y = y.reshape(B, H, W, m // 2, 2).max(axis=4)              # (B,H,W,m//2)
    z = jnp.einsum("bhwc,kc->bhwk", y, w_p) + b_p              # (B,H,W,K)
    return jax.nn.softmax(z, axis=3)


if __name__ == "__main__":
    # Small shapes consistent with the module: params = {'D': 4, 'm': 32, 'K': 8}
    B, D, H, W = 2, 4, 16, 16
    m, K = 32, 8

    key = jax.random.PRNGKey(0)
    k1, k2, k3, k4, k5 = jax.random.split(key, 5)
    ctx = jax.random.normal(k1, (B, D, H, W), dtype=jnp.float32)
    # Deterministic synthetic parameters (PyTorch Linear shapes: (out, in)).
    w_ct = jax.random.normal(k2, (m, D), dtype=jnp.float32) * 0.2
    b_ct = jax.random.normal(k3, (m,), dtype=jnp.float32) * 0.1
    w_p = jax.random.normal(k4, (K, m // 2), dtype=jnp.float32) * 0.2
    b_p = jax.random.normal(k5, (K,), dtype=jnp.float32) * 0.1

    ref = _reference(ctx, w_ct, b_ct, w_p, b_p)

    # 1) Default path: bf16 output, module (B,H,W,K) layout.
    out_bf16 = jax.block_until_ready(pix_object_probility(ctx, w_ct, b_ct, w_p, b_p))
    assert out_bf16.shape == (B, H, W, K), out_bf16.shape
    assert out_bf16.dtype == jnp.bfloat16, out_bf16.dtype
    assert jnp.allclose(out_bf16.astype(jnp.float32), ref, atol=1.5e-2, rtol=1.5e-2), \
        float(jnp.max(jnp.abs(out_bf16.astype(jnp.float32) - ref)))

    # 2) f32 output path (tight check; only MXU matmul rounding differs).
    out_f32 = jax.block_until_ready(
        pix_object_probility(ctx, w_ct, b_ct, w_p, b_p, out_dtype=jnp.float32))
    assert jnp.allclose(out_f32, ref, atol=2e-3, rtol=2e-3), \
        float(jnp.max(jnp.abs(out_f32 - ref)))

    # 3) Channel-major output: no NHWC transpose pass at all.
    out_cm = jax.block_until_ready(
        pix_object_probility(ctx, w_ct, b_ct, w_p, b_p,
                             out_dtype=jnp.float32, channel_major_out=True))
    assert out_cm.shape == (B, K, H, W), out_cm.shape
    assert jnp.allclose(jnp.transpose(out_cm, (0, 2, 3, 1)), ref, atol=2e-3, rtol=2e-3)

    print("KERNEL_OK")
</pallas_src>

<mosaic_0001>
module attributes {stable_mosaic.version = 11 : i64} {
  func.func @_pix_obj_prob_kernel(%arg0: i32, %arg1: i32, %arg2: memref<1x4x256xf32, #tpu.memory_space<vmem>>, %arg3: memref<32x4xf32, #tpu.memory_space<vmem>>, %arg4: memref<32x1xf32, #tpu.memory_space<vmem>>, %arg5: memref<8x16xf32, #tpu.memory_space<vmem>>, %arg6: memref<8x1xf32, #tpu.memory_space<vmem>>, %arg7: memref<1x8x256xbf16, #tpu.memory_space<vmem>>) attributes {dimension_semantics = [#tpu.dimension_semantics<parallel>, #tpu.dimension_semantics<parallel>], iteration_bounds = array<i64: 2, 1>, scalar_prefetch = 0 : i64, scratch_operands = 0 : i64, tpu.core_type = #tpu.core_type<tc>, window_params = [{transform_indices = @transform_0, window_bounds = array<i64: 1, 4, 256>}, {pipeline_mode = #tpu.pipeline_mode<synchronous>, transform_indices = @transform_1, window_bounds = array<i64: 32, 4>}, {pipeline_mode = #tpu.pipeline_mode<synchronous>, transform_indices = @transform_2, window_bounds = array<i64: 32, 1>}, {pipeline_mode = #tpu.pipeline_mode<synchronous>, transform_indices = @transform_3, window_bounds = array<i64: 8, 16>}, {pipeline_mode = #tpu.pipeline_mode<synchronous>, transform_indices = @transform_4, window_bounds = array<i64: 8, 1>}, {transform_indices = @transform_5, window_bounds = array<i64: 1, 8, 256>}]} {
    %c0 = arith.constant 0 : index
    %c0_0 = arith.constant 0 : index
    %c0_1 = arith.constant 0 : index
    %0 = vector.load %arg2[%c0, %c0_0, %c0_1] : memref<1x4x256xf32, #tpu.memory_space<vmem>>, vector<1x4x256xf32>
    %1 = vector.shape_cast %0 : vector<1x4x256xf32> to vector<4x256xf32>
    %c0_2 = arith.constant 0 : index
    %c0_3 = arith.constant 0 : index
    %2 = vector.load %arg3[%c0_2, %c0_3] : memref<32x4xf32, #tpu.memory_space<vmem>>, vector<32x4xf32>
    %cst = arith.constant dense<0.000000e+00> : vector<32x256xf32>
    %3 = tpu.matmul %2, %1, %cst {dimension_numbers = #tpu.dot_dimension_numbers<[1], [0], [0], [1], [0, 0, 1, 1], [], []>} : vector<32x4xf32>, vector<4x256xf32>, vector<32x256xf32> -> vector<32x256xf32>
    %c0_4 = arith.constant 0 : index
    %c0_5 = arith.constant 0 : index
    %4 = vector.load %arg4[%c0_4, %c0_5] : memref<32x1xf32, #tpu.memory_space<vmem>>, vector<32x1xf32>
    %5 = vector.broadcast %4 : vector<32x1xf32> to vector<32x256xf32>
    %6 = arith.addf %3, %5 : vector<32x256xf32>
    %7 = vector.extract_strided_slice %6 {offsets = [0, 0], sizes = [16, 256], strides = [1, 1]} : vector<32x256xf32> to vector<16x256xf32>
    %8 = vector.extract_strided_slice %6 {offsets = [16, 0], sizes = [16, 256], strides = [1, 1]} : vector<32x256xf32> to vector<16x256xf32>
    %9 = arith.maximumf %7, %8 : vector<16x256xf32>
    %c0_6 = arith.constant 0 : index
    %c0_7 = arith.constant 0 : index
    %10 = vector.load %arg5[%c0_6, %c0_7] : memref<8x16xf32, #tpu.memory_space<vmem>>, vector<8x16xf32>
    %cst_8 = arith.constant dense<0.000000e+00> : vector<8x256xf32>
    %11 = tpu.matmul %10, %9, %cst_8 {dimension_numbers = #tpu.dot_dimension_numbers<[1], [0], [0], [1], [0, 0, 1, 1], [], []>} : vector<8x16xf32>, vector<16x256xf32>, vector<8x256xf32> -> vector<8x256xf32>
    %c0_9 = arith.constant 0 : index
    %c0_10 = arith.constant 0 : index
    %12 = vector.load %arg6[%c0_9, %c0_10] : memref<8x1xf32, #tpu.memory_space<vmem>>, vector<8x1xf32>
    %13 = vector.broadcast %12 : vector<8x1xf32> to vector<8x256xf32>
    %14 = arith.addf %11, %13 : vector<8x256xf32>
    %cst_11 = arith.constant dense<0xFF800000> : vector<256xf32>
    %15 = vector.multi_reduction <maximumf>, %14, %cst_11 [0] : vector<8x256xf32> to vector<256xf32>
    %16 = vector.shape_cast %15 : vector<256xf32> to vector<1x256xf32>
    %17 = vector.broadcast %16 : vector<1x256xf32> to vector<8x256xf32>
    %18 = arith.subf %14, %17 : vector<8x256xf32>
    %19 = math.exp %18 : vector<8x256xf32>
    %cst_12 = arith.constant dense<0.000000e+00> : vector<256xf32>
    %20 = vector.multi_reduction <add>, %19, %cst_12 [0] : vector<8x256xf32> to vector<256xf32>
    %21 = vector.shape_cast %20 : vector<256xf32> to vector<1x256xf32>
    %22 = vector.broadcast %21 : vector<1x256xf32> to vector<8x256xf32>
    %23 = arith.divf %19, %22 : vector<8x256xf32>
    %24 = arith.truncf %23 : vector<8x256xf32> to vector<8x256xbf16>
    %c0_13 = arith.constant 0 : index
    %c0_14 = arith.constant 0 : index
    %c0_15 = arith.constant 0 : index
    %25 = vector.load %arg7[%c0_13, %c0_14, %c0_15] : memref<1x8x256xbf16, #tpu.memory_space<vmem>>, vector<1x8x256xbf16>
    %26 = vector.shape_cast %25 : vector<1x8x256xbf16> to vector<8x256xbf16>
    %27 = vector.shape_cast %24 : vector<8x256xbf16> to vector<1x8x256xbf16>
    tpu.vector_store %arg7[%c0_13, %c0_14, %c0_15], %27 {strides = array<i32>} : memref<1x8x256xbf16, #tpu.memory_space<vmem>>, vector<1x8x256xbf16>,
    return
  }
  func.func @transform_0(%arg0: i32, %arg1: i32) -> (i32, i32, i32) {
    %c0_i32 = arith.constant 0 : i32
    %c0_i32_0 = arith.constant 0 : i32
    return %arg0, %c0_i32, %arg1 : i32, i32, i32
  }
  func.func @transform_1(%arg0: i32, %arg1: i32) -> (i32, i32) {
    %c0_i32 = arith.constant 0 : i32
    %c0_i32_0 = arith.constant 0 : i32
    %c0_i32_1 = arith.constant 0 : i32
    return %c0_i32, %c0_i32_0 : i32, i32
  }
  func.func @transform_2(%arg0: i32, %arg1: i32) -> (i32, i32) {
    %c0_i32 = arith.constant 0 : i32
    %c0_i32_0 = arith.constant 0 : i32
    %c0_i32_1 = arith.constant 0 : i32
    return %c0_i32, %c0_i32_0 : i32, i32
  }
  func.func @transform_3(%arg0: i32, %arg1: i32) -> (i32, i32) {
    %c0_i32 = arith.constant 0 : i32
    %c0_i32_0 = arith.constant 0 : i32
    %c0_i32_1 = arith.constant 0 : i32
    return %c0_i32, %c0_i32_0 : i32, i32
  }
  func.func @transform_4(%arg0: i32, %arg1: i32) -> (i32, i32) {
    %c0_i32 = arith.constant 0 : i32
    %c0_i32_0 = arith.constant 0 : i32
    %c0_i32_1 = arith.constant 0 : i32
    return %c0_i32, %c0_i32_0 : i32, i32
  }
  func.func @transform_5(%arg0: i32, %arg1: i32) -> (i32, i32, i32) {
    %c0_i32 = arith.constant 0 : i32
    %c0_i32_0 = arith.constant 0 : i32
    return %arg0, %c0_i32, %arg1 : i32, i32, i32
  }
}

</mosaic_0001>

<llo_original>
// kernel: pix_object_probility.1
$region0: #{pix_object_probility.1}
  #allocation0 [shape = 'u32[]', space=smem, size = 0x4, offset = 0x4, fixed_abs, tag = 'smem constant byte address 0x4 - core index']
  #allocation1 [shape = 'u32[72,128]{1,0:T(1,128)}', space=vmem, size = 0x9000, scoped, tag = 'internal scratch']
  %s0 = inlined_call_operand.vmem [shape: f32[2,4,256], index: 0, kind: input, shape index: {}]
  %s1 = inlined_call_operand.vmem [shape: f32[32,4], index: 1, kind: input, shape index: {}]
  %s2 = inlined_call_operand.vmem [shape: f32[32,1], index: 2, kind: input, shape index: {}]
  %s3 = inlined_call_operand.vmem [shape: f32[8,16], index: 3, kind: input, shape index: {}]
  %s4 = inlined_call_operand.vmem [shape: f32[8,1], index: 4, kind: input, shape index: {}]
  %s5 = inlined_call_operand.vmem [shape: bf16[2,8,256], index: 5, kind: output, shape index: {}]
  %s6 = sld [smem:[#allocation0]]
  $region53: #{pix_object_probility.1} parent=0
    _
  %s8 = ssub.s32 1, %s6
  %s9 = scalar_select 0, %s8, %s6
  loop: start=0, step=1, limit=4
  $region2: #{pix_object_probility.1} parent=0 // loop_pre_header
    _
  $region3: #{pix_object_probility.1} parent=0 // loop_header
    %s11 = sphi 0, %s15
    %p12 = scmp.ge.s32.totalorder %s11, 4
    %s18 = sphi 0, %s30
    %s19 = sphi 0, %s26
    %s20 = sphi 0, %s18
    %s21 = sphi 0, %s19
    %s22 = sphi 0, %s20
    %s23 = sphi 0, %s21
    %s35 = sphi 0, %s37
    %s38 = sphi 0, %s35
    %s39 = sphi 0, %s38
    %s55 = sphi 0, %s39
    %s59 = sphi 0, %s59
    %s61 = sphi 0, %s59
    %s62 = sphi 0, %s61
    %s76 = sphi 0, %s62
    %s80 = sphi 0, %s80
    %s82 = sphi 0, %s80
    %s83 = sphi 0, %s82
    %s97 = sphi 0, %s83
    %s101 = sphi 0, %s101
    %s103 = sphi 0, %s101
    %s104 = sphi 0, %s103
    %s118 = sphi 0, %s104
    %s122 = sphi 0, %s122
    %s124 = sphi 0, %s122
    %s125 = sphi 0, %s124
    %s139 = sphi 0, %s125
    %s147 = sphi 0, %s149
    %s150 = sphi 0, %s147
    %s151 = sphi 0, %s150
    %s167 = sphi 0, %s151
  $region4: #{pix_object_probility.1} parent=0 // loop_header_branch
    %14 = sbr.rel (%p12) target = $region8
  $region5: #{pix_object_probility.1} parent=0 // loop_body
    %s16 = ssub.s32 %s11, 1
    %s17 = ssub.s32 %s11, 2
    %s24 = sadd.s32 1, %s19
    %p25 = scmp.ge.s32.totalorder %s24, 1
    %s26 = scalar_select %p25, 0, %s24
    %s27 = sadd.s32 1, %s18
    %s28 = scalar_select %p25, %s27, %s18
    %p29 = scmp.ge.s32.totalorder %s28, 2
    %s30 = scalar_select %p29, 0, %s28
    %s31 = ssub.s32 %s18, %s30
    %s32 = ssub.s32 %s19, %s26
    %s33 = sor.u32 %s31, %s32
    %p34 = scmp.eq.s32.totalorder %s33, 0
    %s36 = sadd.s32 %s35, 1
    %s37 = scalar_select %p34, %s35, %s36
    %p40 = pneg %p34
    %p41 = scmp.eq.s32.totalorder %s11, 1
    %p42 = por %p40, %p41
    %p43 = scmp.ne.s32.totalorder %s35, %s38
    %p44 = scmp.eq.s32.totalorder %s11, 0
    %p45 = por %p43, %p44
    %p46 = scmp.ne.s32.totalorder %s35, %s38
    %p47 = scmp.eq.s32.totalorder %s16, 1
    %p48 = por %p46, %p47
    %p49 = scmp.ne.s32.totalorder %s38, %s39
    %p50 = scmp.eq.s32.totalorder %s16, 0
    %p51 = por %p49, %p50
    %p52 = scmp.ne.s32.totalorder %s38, %s39
    %p53 = scmp.eq.s32.totalorder %s17, 1
    %p54 = por %p52, %p53
    %p56 = scmp.ne.s32.totalorder %s39, %s55
    %p57 = scmp.eq.s32.totalorder %s17, 0
    %p58 = por %p56, %p57
    %s60 = sadd.s32 %s59, 1
    %p63 = scmp.eq.s32.totalorder %s11, 1
    %p64 = scmp.ne.s32.totalorder %s59, %s61
    %p65 = scmp.eq.s32.totalorder %s11, 0
    %p66 = por %p64, %p65
    %p67 = scmp.ne.s32.totalorder %s59, %s61
    %p68 = scmp.eq.s32.totalorder %s16, 1
    %p69 = por %p67, %p68
    %p70 = scmp.ne.s32.totalorder %s61, %s62
    %p71 = scmp.eq.s32.totalorder %s16, 0
    %p72 = por %p70, %p71
    %p73 = scmp.ne.s32.totalorder %s61, %s62
    %p74 = scmp.eq.s32.totalorder %s17, 1
    %p75 = por %p73, %p74
    %p77 = scmp.ne.s32.totalorder %s62, %s76
    %p78 = scmp.eq.s32.totalorder %s17, 0
    %p79 = por %p77, %p78
    %s81 = sadd.s32 %s80, 1
    %p84 = scmp.eq.s32.totalorder %s11, 1
    %p85 = scmp.ne.s32.totalorder %s80, %s82
    %p86 = scmp.eq.s32.totalorder %s11, 0
    %p87 = por %p85, %p86
    %p88 = scmp.ne.s32.totalorder %s80, %s82
    %p89 = scmp.eq.s32.totalorder %s16, 1
    %p90 = por %p88, %p89
    %p91 = scmp.ne.s32.totalorder %s82, %s83
    %p92 = scmp.eq.s32.totalorder %s16, 0
    %p93 = por %p91, %p92
    %p94 = scmp.ne.s32.totalorder %s82, %s83
    %p95 = scmp.eq.s32.totalorder %s17, 1
    %p96 = por %p94, %p95
    %p98 = scmp.ne.s32.totalorder %s83, %s97
    %p99 = scmp.eq.s32.totalorder %s17, 0
    %p100 = por %p98, %p99
    %s102 = sadd.s32 %s101, 1
    %p105 = scmp.eq.s32.totalorder %s11, 1
    %p106 = scmp.ne.s32.totalorder %s101, %s103
    %p107 = scmp.eq.s32.totalorder %s11, 0
    %p108 = por %p106, %p107
    %p109 = scmp.ne.s32.totalorder %s101, %s103
    %p110 = scmp.eq.s32.totalorder %s16, 1
    %p111 = por %p109, %p110
    %p112 = scmp.ne.s32.totalorder %s103, %s104
    %p113 = scmp.eq.s32.totalorder %s16, 0
    %p114 = por %p112, %p113
    %p115 = scmp.ne.s32.totalorder %s103, %s104
    %p116 = scmp.eq.s32.totalorder %s17, 1
    %p117 = por %p115, %p116
    %p119 = scmp.ne.s32.totalorder %s104, %s118
    %p120 = scmp.eq.s32.totalorder %s17, 0
    %p121 = por %p119, %p120
    %s123 = sadd.s32 %s122, 1
    %p126 = scmp.eq.s32.totalorder %s11, 1
    %p127 = scmp.ne.s32.totalorder %s122, %s124
    %p128 = scmp.eq.s32.totalorder %s11, 0
    %p129 = por %p127, %p128
    %p130 = scmp.ne.s32.totalorder %s122, %s124
    %p131 = scmp.eq.s32.totalorder %s16, 1
    %p132 = por %p130, %p131
    %p133 = scmp.ne.s32.totalorder %s124, %s125
    %p134 = scmp.eq.s32.totalorder %s16, 0
    %p135 = por %p133, %p134
    %p136 = scmp.ne.s32.totalorder %s124, %s125
    %p137 = scmp.eq.s32.totalorder %s17, 1
    %p138 = por %p136, %p137
    %p140 = scmp.ne.s32.totalorder %s125, %s139
    %p141 = scmp.eq.s32.totalorder %s17, 0
    %p142 = por %p140, %p141
    %s143 = ssub.s32 %s18, %s30
    %s144 = ssub.s32 %s19, %s26
    %s145 = sor.u32 %s143, %s144
    %p146 = scmp.eq.s32.totalorder %s145, 0
    %s148 = sadd.s32 %s147, 1
    %s149 = scalar_select %p146, %s147, %s148
    %p152 = pneg %p146
    %p153 = scmp.eq.s32.totalorder %s11, 1
    %p154 = por %p152, %p153
    %p155 = scmp.ne.s32.totalorder %s147, %s150
    %p156 = scmp.eq.s32.totalorder %s11, 0
    %p157 = por %p155, %p156
    %p158 = scmp.ne.s32.totalorder %s147, %s150
    %p159 = scmp.eq.s32.totalorder %s16, 1
    %p160 = por %p158, %p159
    %p161 = scmp.ne.s32.totalorder %s150, %s151
    %p162 = scmp.eq.s32.totalorder %s16, 0
    %p163 = por %p161, %p162
    %p164 = scmp.ne.s32.totalorder %s150, %s151
    %p165 = scmp.eq.s32.totalorder %s17, 1
    %p166 = por %p164, %p165
    %p168 = scmp.ne.s32.totalorder %s151, %s167
    %p169 = scmp.eq.s32.totalorder %s17, 0
    %p170 = por %p168, %p169
    %p171 = scmp.le.s32.totalorder 1, %s11
    %p172 = scmp.lt.s32.totalorder %s11, 3
    %p173 = pnand %p171, %p172
    %p174 = pneg %p173
    // Predicated region
    $region9: #{pix_object_probility.1} parent=5 // pred_check
      _
    $region10: #{pix_object_probility.1} parent=5 // pred_check_branch
      %176 = sbr.rel (%p173) target = $region12
    $region11: #{pix_object_probility.1} parent=5 // pred_region
      %s177 = ssub.s32 %s11, 1
      // Predicated region
      $region13: #{pix_object_probility.1} parent=11 // pred_check
        %p178 = pneg %p72
      $region14: #{pix_object_probility.1} parent=11 // pred_check_branch
        %180 = sbr.rel (%p178) target = $region16
      $region15: #{pix_object_probility.1} parent=11 // pred_region
        _
      $region16: #{pix_object_probility.1} parent=11 // pred_fallthru
        _
      // Predicated region
      $region17: #{pix_object_probility.1} parent=11 // pred_check
        %p181 = pneg %p93
      $region18: #{pix_object_probility.1} parent=11 // pred_check_branch
        %183 = sbr.rel (%p181) target = $region20
      $region19: #{pix_object_probility.1} parent=11 // pred_region
        _
      $region20: #{pix_object_probility.1} parent=11 // pred_fallthru
        _
      // Predicated region
      $region21: #{pix_object_probility.1} parent=11 // pred_check
        %p184 = pneg %p114
      $region22: #{pix_object_probility.1} parent=11 // pred_check_branch
        %186 = sbr.rel (%p184) target = $region24
      $region23: #{pix_object_probility.1} parent=11 // pred_region
        _
      $region24: #{pix_object_probility.1} parent=11 // pred_fallthru
        _
      // Predicated region
      $region25: #{pix_object_probility.1} parent=11 // pred_check
        %p187 = pneg %p135
      $region26: #{pix_object_probility.1} parent=11 // pred_check_branch
        %189 = sbr.rel (%p187) target = $region28
      $region27: #{pix_object_probility.1} parent=11 // pred_region
        _
      $region28: #{pix_object_probility.1} parent=11 // pred_fallthru
        _
    $region12: #{pix_object_probility.1} parent=5 // pred_fallthru
      _
    %p190 = scmp.lt.s32.totalorder %s11, 2
    // Predicated region
    $region29: #{pix_object_probility.1} parent=5 // pred_check
      %p191 = pneg %p190
    $region30: #{pix_object_probility.1} parent=5 // pred_check_branch
      %193 = sbr.rel (%p191) target = $region32
    $region31: #{pix_object_probility.1} parent=5 // pred_region
      // Predicated region
      $region33: #{pix_object_probility.1} parent=31 // pred_check
        %p194 = pneg %p45
      $region34: #{pix_object_probility.1} parent=31 // pred_check_branch
        %196 = sbr.rel (%p194) target = $region36
      $region35: #{pix_object_probility.1} parent=31 // pred_region
        %s197 = smul.u32 2, %s19
        %p198 = scmp.lt.s32.totalorder %s18, 1
        %s199 = scalar_select %p198, %s18, 1
        %p200 = scmp.lt.s32.totalorder %s197, 1
        %s201 = scalar_select %p200, %s197, 1
        %s202 = smul.addr %s199, 2
        %s203 = sadd.s32 %s201, %s202
        %s204 = smul.addr %s203, 4
        %s205 = scalar_lea.vmem %s0, %s204
        %s206 = smul.u32 2, %s19
      $region36: #{pix_object_probility.1} parent=31 // pred_fallthru
        _
    $region32: #{pix_object_probility.1} parent=5 // pred_fallthru
      _
    %p207 = scmp.le.s32.totalorder 1, %s11
    %p208 = scmp.lt.s32.totalorder %s11, 3
    %p209 = pnand %p207, %p208
    %p210 = pneg %p209
    // Predicated region
    $region37: #{pix_object_probility.1} parent=5 // pred_check
      _
    $region38: #{pix_object_probility.1} parent=5 // pred_check_branch
      %212 = sbr.rel (%p209) target = $region40
    $region39: #{pix_object_probility.1} parent=5 // pred_region
      %s213 = ssub.s32 %s11, 1
      %s214 = smul.u32 2, %s21
      %p215 = scmp.lt.s32.totalorder %s20, 1
      %s216 = scalar_select %p215, %s20, 1
      %p217 = scmp.lt.s32.totalorder %s214, 1
      %s218 = scalar_select %p217, %s214, 1
      %s219 = smul.addr %s216, 2
      %s220 = sadd.s32 %s218, %s219
      %s221 = smul.addr %s220, 4
      %s222 = scalar_lea.vmem %s0, %s221
      %p223 = pneg %p51
      %p224 = pneg %p48
      %p225 = pneg %p72
      %p226 = pneg %p69
      %p227 = pneg %p93
      %p228 = pneg %p90
      %p229 = pneg %p114
      %p230 = pneg %p111
      %p231 = pneg %p135
      %p232 = pneg %p132
      %p233 = pneg %p163
      %p234 = pneg %p160
      %s235 = smul.u32 2, %s21
      %p236 = scmp.lt.s32.totalorder %s20, 1
      %s237 = scalar_select %p236, %s20, 1
      %p238 = scmp.lt.s32.totalorder %s235, 1
      %s239 = scalar_select %p238, %s235, 1
      %s240 = smul.addr %s237, 2
      %s241 = sadd.s32 %s239, %s240
      %s242 = smul.addr %s241, 4
      %s243 = scalar_lea.vmem %s5, %s242
      %s244 = smul.u32 2, %s21
      %p245 = scmp.lt.s32.totalorder %s20, 1
      %s246 = scalar_select %p245, %s20, 1
      %p247 = scmp.lt.s32.totalorder %s244, 1
      %s248 = scalar_select %p247, %s244, 1
      %s249 = smul.addr %s246, 2
      %s250 = sadd.s32 %s248, %s249
      %s251 = smul.addr %s250, 4
      %s252 = scalar_lea.vmem %s0, %s251
      %s253 = smul.u32 2, %s21
      %s254 = smul.u32 2, %s21
      %p255 = scmp.lt.s32.totalorder %s20, 1
      %s256 = scalar_select %p255, %s20, 1
      %p257 = scmp.lt.s32.totalorder %s254, 1
      %s258 = scalar_select %p257, %s254, 1
      %s259 = smul.addr %s256, 2
      %s260 = sadd.s32 %s258, %s259
      %s261 = smul.addr %s260, 4
      %s262 = scalar_lea.vmem %s5, %s261
      %s263 = smul.u32 2, %s21
      %v264 = vld [vmem:[%s252] sm:$0xff]
      %v265 = vld [vmem:[%s1] sm:$0xff]
      %v266 = vld [vmem:[%s1 + $0x8] sm:$0xff]
      %v267 = vld [vmem:[%s1 + $0x10] sm:$0xff]
      %v268 = vld [vmem:[%s1 + $0x18] sm:$0xff]
      %v269 = vld [vmem:[%s2] sm:$0xff]
      %v270 = vld [vmem:[%s2 + $0x8] sm:$0xff]
      %v271 = vld [vmem:[%s2 + $0x10] sm:$0xff]
      %v272 = vld [vmem:[%s2 + $0x18] sm:$0xff]
      %274 = vset.pattern.permute.xlu0 0
      %275 = vperm.xlu0 %274, %v269
      %v276 = vpop.permute.xlu0 %275
      %279 = vset.pattern.permute.xlu0 0
      %280 = vperm.xlu0 %279, %v270
      %v281 = vpop.permute.xlu0 %280
      %284 = vset.pattern.permute.xlu0 0
      %285 = vperm.xlu0 %284, %v271
      %v286 = vpop.permute.xlu0 %285
      %289 = vset.pattern.permute.xlu0 0
      %290 = vperm.xlu0 %289, %v272
      %v291 = vpop.permute.xlu0 %290
      %294 = vst [vmem:[#allocation1] ss:$2 sm:$0xff] %v264
      %v295 = vld.sshfl [vmem:[#allocation1] sm:$0xff pattern:$0x75316420]
      %v296 = vld.sshfl [vmem:[#allocation1 + $0x8] sm:$0xff pattern:$0x75316420]
      %vm297 = vcmask 31744
      %v299 = vsel %vm297, %v265, 0
      %v302 = vsel %vm297, %v266, 0
      %v305 = vsel %vm297, %v267, 0
      %v308 = vsel %vm297, %v268, 0
      %vm310 = vcmask 1043456
      %v311 = vsel %vm310, %v295, 0
      %v313 = vsel %vm310, %v296, 0
      %315 = vmatpush.msra.mxu0 0.0
      %316 = vmatpush.msra.mxu0 0.0
      %317 = vmatpush.msra.mxu0 0.0
      %318 = vmatpush.msra.mxu0 0.0
      %319 = vmatpush.msra.mxu0 0.0
      %320 = vmatpush.msra.mxu0 0.0
      %321 = vmatpush.msra.mxu0 0.0
      %322 = vmatpush.msra.mxu0 0.0
      %323 = vmatpush.msra.mxu0 0.0
      %324 = vmatpush.msra.mxu0 0.0
      %325 = vmatpush.msra.mxu0 0.0
      %326 = vmatpush.msra.mxu0 0.0
      %327 = vmatpush.msra.mxu0 0.0
      %328 = vmatpush.msra.mxu0 0.0
      %329 = vmatpush.msra.mxu0 0.0
      %330 = vmatpush.msra.mxu0 %v311
      %331 = vmatmul.f32.gmra.mxu0 %v299
      %v332 = vpop.f32.mrf.mxu0
      %v333 = vadd.f32 %v276, %v332
      %334 = vmatmul.f32.gmra.mxu0 %v302
      %v335 = vpop.f32.mrf.mxu0
      %v336 = vadd.f32 %v281, %v335
      %337 = vmatmul.f32.gmra.mxu0 %v305
      %v338 = vpop.f32.mrf.mxu0
      %v339 = vadd.f32 %v286, %v338
      %340 = vmatmul.f32.gmra.mxu0 %v308
      %v341 = vpop.f32.mrf.mxu0
      %v342 = vadd.f32 %v291, %v341
      %343 = vdwg.mxu0
      %344 = vmatpush.msra.mxu0 0.0
      %345 = vmatpush.msra.mxu0 0.0
      %346 = vmatpush.msra.mxu0 0.0
      %347 = vmatpush.msra.mxu0 0.0
      %348 = vmatpush.msra.mxu0 0.0
      %349 = vmatpush.msra.mxu0 0.0
      %350 = vmatpush.msra.mxu0 0.0
      %351 = vmatpush.msra.mxu0 0.0
      %352 = vmatpush.msra.mxu0 0.0
      %353 = vmatpush.msra.mxu0 0.0
      %354 = vmatpush.msra.mxu0 0.0
      %355 = vmatpush.msra.mxu0 0.0
      %356 = vmatpush.msra.mxu0 0.0
      %357 = vmatpush.msra.mxu0 0.0
      %358 = vmatpush.msra.mxu0 0.0
      %359 = vmatpush.msra.mxu0 %v313
      %360 = vmatmul.f32.gmra.mxu0 %v299
      %v361 = vpop.f32.mrf.mxu0
      %v362 = vadd.f32 %v276, %v361
      %363 = vmatmul.f32.gmra.mxu0 %v302
      %v364 = vpop.f32.mrf.mxu0
      %v365 = vadd.f32 %v281, %v364
      %366 = vmatmul.f32.gmra.mxu0 %v305
      %v367 = vpop.f32.mrf.mxu0
      %v368 = vadd.f32 %v286, %v367
      %369 = vmatmul.f32.gmra.mxu0 %v308
      %v370 = vpop.f32.mrf.mxu0
      %v371 = vadd.f32 %v291, %v370
      %372 = vdwg.mxu0
      %v373 = vmax.f32 %v333, %v339
      %v374 = vmax.f32 %v362, %v368
      %v375 = vmax.f32 %v336, %v342
      %v376 = vmax.f32 %v365, %v371
      %v377 = vld [vmem:[%s3] sm:$0xff]
      %v378 = vld [vmem:[%s4] sm:$0xff]
      %380 = vset.pattern.permute.xlu0 0
      %381 = vperm.xlu0 %380, %v378
      %v382 = vpop.permute.xlu0 %381
      %vm384 = vcmask 130048
      %v386 = vsel %vm384, %v377, 0
      %388 = vmatpush.msra.mxu0 0.0
      %389 = vmatpush.msra.mxu0 0.0
      %390 = vmatpush.msra.mxu0 0.0
      %391 = vmatpush.msra.mxu0 0.0
      %392 = vmatpush.msra.mxu0 0.0
      %393 = vmatpush.msra.mxu0 0.0
      %394 = vmatpush.msra.mxu0 0.0
      %395 = vmatpush.msra.mxu0 0.0
      %396 = vmatpush.msra.mxu0 0.0
      %397 = vmatpush.msra.mxu0 0.0
      %398 = vmatpush.msra.mxu0 0.0
      %399 = vmatpush.msra.mxu0 0.0
      %400 = vmatpush.msra.mxu0 0.0
      %401 = vmatpush.msra.mxu0 0.0
      %402 = vmatpush.msra.mxu0 %v375
      %403 = vmatpush.msra.mxu0 %v373
      %404 = vmatmul.f32.gmra.mxu0 %v386
      %v405 = vpop.f32.mrf.mxu0
      %v406 = vadd.f32 %v382, %v405
      %407 = vdwg.mxu0
      %408 = vmatpush.msra.mxu0 0.0
      %409 = vmatpush.msra.mxu0 0.0
      %410 = vmatpush.msra.mxu0 0.0
      %411 = vmatpush.msra.mxu0 0.0
      %412 = vmatpush.msra.mxu0 0.0
      %413 = vmatpush.msra.mxu0 0.0
      %414 = vmatpush.msra.mxu0 0.0
      %415 = vmatpush.msra.mxu0 0.0
      %416 = vmatpush.msra.mxu0 0.0
      %417 = vmatpush.msra.mxu0 0.0
      %418 = vmatpush.msra.mxu0 0.0
      %419 = vmatpush.msra.mxu0 0.0
      %420 = vmatpush.msra.mxu0 0.0
      %421 = vmatpush.msra.mxu0 0.0
      %422 = vmatpush.msra.mxu0 %v376
      %423 = vmatpush.msra.mxu0 %v374
      %424 = vmatmul.f32.gmra.mxu0 %v386
      %v425 = vpop.f32.mrf.mxu0
      %v426 = vadd.f32 %v382, %v425
      %427 = vdwg.mxu0
      %v428 = vrot.slane %v406, 4
      %v429 = vmax.f32 %v406, %v428
      %v430 = vrot.slane %v429, 2
      %v431 = vmax.f32 %v429, %v430
      %v432 = vrot.slane %v431, 1
      %v433 = vmax.f32 %v431, %v432
      %v434 = vrot.slane %v426, 4
      %v435 = vmax.f32 %v426, %v434
      %v436 = vrot.slane %v435, 2
      %v437 = vmax.f32 %v435, %v436
      %v438 = vrot.slane %v437, 1
      %v439 = vmax.f32 %v437, %v438
      %v440 = vsub.f32 %v406, %v433
      %v441 = vsub.f32 %v426, %v439
      %v442 = vmul.f32 %v440, 1.442695
      %v443 = vpow.pop %v442
      %v444 = vmul.f32 %v441, 1.442695
      %v445 = vpow.pop %v444
      %v446 = vrot.slane %v443, 4
      %v447 = vadd.f32 %v443, %v446
      %v448 = vrot.slane %v447, 2
      %v449 = vadd.f32 %v447, %v448
      %v450 = vrot.slane %v449, 1
      %v451 = vadd.f32 %v449, %v450
      %v452 = vrot.slane %v445, 4
      %v453 = vadd.f32 %v445, %v452
      %v454 = vrot.slane %v453, 2
      %v455 = vadd.f32 %v453, %v454
      %v456 = vrot.slane %v455, 1
      %v457 = vadd.f32 %v455, %v456
      %v458 = vrcp.pop %v451
      %v459 = vmul.f32 %v451, %v458
      %v460 = vsub.f32 1.0, %v459
      %v461 = vmul.f32 %v458, %v460
      %v462 = vadd.f32 %v458, %v461
      %vm463 = vweird.f32 %v451
      %vm464 = vweird.f32 %v458
      %vm465 = vmor %vm463, %vm464
      %v466 = vsel %vm465, %v458, %v462
      %v467 = vand.u32 2147483647, %v451
      %vm468 = vcmp.eq.f32.partialorder %v467, 8.507059e+37
      %v469 = vand.u32 %v451, 2147483648
      %v470 = vor.u32 1.1754944e-38, %v469
      %v471 = vsel %vm468, %v470, %v466
      %v472 = vmul.f32 %v443, %v471
      %v473 = vrcp.pop %v457
      %v474 = vmul.f32 %v457, %v473
      %v475 = vsub.f32 1.0, %v474
      %v476 = vmul.f32 %v473, %v475
      %v477 = vadd.f32 %v473, %v476
      %vm478 = vweird.f32 %v457
      %vm479 = vweird.f32 %v473
      %vm480 = vmor %vm478, %vm479
      %v481 = vsel %vm480, %v473, %v477
      %v482 = vand.u32 2147483647, %v457
      %vm483 = vcmp.eq.f32.partialorder %v482, 8.507059e+37
      %v484 = vand.u32 %v457, 2147483648
      %v485 = vor.u32 1.1754944e-38, %v484
      %v486 = vsel %vm483, %v485, %v481
      %v487 = vmul.f32 %v445, %v486
      %v488 = vpack.c.bf16 %v487, %v472
      %489 = vst [vmem:[%s262] sm:$0xff] %v488
      %s490 = smul.u32 2, %s21
      %p491 = scmp.lt.s32.totalorder %s20, 1
      %s492 = scalar_select %p491, %s20, 1
      %p493 = scmp.lt.s32.totalorder %s490, 1
      %s494 = scalar_select %p493, %s490, 1
      %s495 = smul.addr %s492, 2
      %s496 = sadd.s32 %s494, %s495
      %s497 = smul.addr %s496, 4
      %s498 = scalar_lea.vmem %s5, %s497
      // Predicated region
      $region41: #{pix_object_probility.1} parent=39 // pred_check
        %p499 = pneg %p160
      $region42: #{pix_object_probility.1} parent=39 // pred_check_branch
        %501 = sbr.rel (%p499) target = $region44
      $region43: #{pix_object_probility.1} parent=39 // pred_region
        %s502 = smul.u32 2, %s21
      $region44: #{pix_object_probility.1} parent=39 // pred_fallthru
        _
    $region40: #{pix_object_probility.1} parent=5 // pred_fallthru
      _
    %p503 = scmp.le.s32.totalorder 2, %s11
    // Predicated region
    $region45: #{pix_object_probility.1} parent=5 // pred_check
      %p504 = pneg %p503
    $region46: #{pix_object_probility.1} parent=5 // pred_check_branch
      %506 = sbr.rel (%p504) target = $region48
    $region47: #{pix_object_probility.1} parent=5 // pred_region
      %s507 = ssub.s32 %s11, 2
      // Predicated region
      $region49: #{pix_object_probility.1} parent=47 // pred_check
        %p508 = pneg %p166
      $region50: #{pix_object_probility.1} parent=47 // pred_check_branch
        %510 = sbr.rel (%p508) target = $region52
      $region51: #{pix_object_probility.1} parent=47 // pred_region
        %s511 = smul.u32 2, %s23
        %p512 = scmp.lt.s32.totalorder %s22, 1
        %s513 = scalar_select %p512, %s22, 1
        %p514 = scmp.lt.s32.totalorder %s511, 1
        %s515 = scalar_select %p514, %s511, 1
        %s516 = smul.addr %s513, 2
        %s517 = sadd.s32 %s515, %s516
        %s518 = smul.addr %s517, 4
        %s519 = scalar_lea.vmem %s5, %s518
      $region52: #{pix_object_probility.1} parent=47 // pred_fallthru
        _
    $region48: #{pix_object_probility.1} parent=5 // pred_fallthru
      _
  $region6: #{pix_object_probility.1} parent=0 // loop_footer
    %s15 = sadd.s32 1, %s11
  $region7: #{pix_object_probility.1} parent=0 // loop_footer_branch
    %10 = sbr.rel target = $region3
  $region8: #{pix_object_probility.1} parent=0 // loop_exit
    _

</llo_original>
